<compile_context>
chip_gen: v7x
topology: tpu7x:2x2x1
jax: 0.10.0
libtpu: 0.0.40
codegen_flags: <defaults>
</compile_context>

<pallas_src>
import jax
import jax.numpy as jnp
from jax.experimental import pallas as pl
from jax.experimental.pallas import tpu as pltpu

# ---------------- model dims ----------------
B, C, H, W = 2, 4, 16, 16          # input: (B, C, H, W) NCHW
HIDDEN = 64                        # hidden_dim (encoder output channels)
FC1, FC2, NUM_CLASSES = 256, 128, 2
HW = H * W


def _classifier_kernel(
    x_ref,        # (B, C, HW)         NCHW flattened over space; HW on lanes
    w_enc_ref,    # (HIDDEN, C)        synthetic encoder 1x1-conv weight (out, in)
    b_enc_ref,    # (HIDDEN, 1)
    w1_ref,       # (HIDDEN, FC1)
    b1_ref,       # (1, FC1)
    w2_ref,       # (FC1, FC2)
    b2_ref,       # (1, FC2)
    w3_ref,       # (FC2, NUM_CLASSES)
    b3_ref,       # (1, NUM_CLASSES)
    out_ref,      # (B, NUM_CLASSES)
):
    batch = x_ref.shape[0]
    hw = x_ref.shape[2]

    # ---- synthetic encoder: 1x1 conv + ReLU, then avg-pool, per batch row ----
    # TODO(synk): real pretrained_encoder architecture is unspecified; using a
    # deterministic 1x1-conv encoder producing hidden_dim feature channels.
    w_enc = w_enc_ref[...]                                  # (HIDDEN, C)
    b_enc = b_enc_ref[...]                                  # (HIDDEN, 1)
    pool_vec = jnp.full((1, hw), 1.0 / hw, dtype=jnp.float32)

    rows = []
    for b in range(batch):                                  # B is tiny & static
        xb = x_ref[b]                                       # (C, HW), lane-dense
        feat = jnp.dot(w_enc, xb,
                       preferred_element_type=jnp.float32) + b_enc
        feat = jnp.maximum(feat, 0.0)                       # (HIDDEN, HW)
        # AdaptiveAvgPool2d(1): (1, HW) contracted with feat's HW (lane) axis
        # -> a (1, HIDDEN) row, computed on the MXU.
        rows.append(jax.lax.dot_general(
            pool_vec, feat,
            dimension_numbers=(((1,), (1,)), ((), ())),
            preferred_element_type=jnp.float32))            # (1, HIDDEN)
    pooled = jnp.concatenate(rows, axis=0)                  # (B, HIDDEN)

    # ---- batched MLP head (Dropout is identity in eval mode) ----
    h1 = jnp.maximum(
        jnp.dot(pooled, w1_ref[...], preferred_element_type=jnp.float32)
        + b1_ref[...], 0.0)                                 # (B, FC1)
    h2 = jnp.maximum(
        jnp.dot(h1, w2_ref[...], preferred_element_type=jnp.float32)
        + b2_ref[...], 0.0)                                 # (B, FC2)
    logits = (jnp.dot(h2, w3_ref[...], preferred_element_type=jnp.float32)
              + b3_ref[...])                                # (B, NUM_CLASSES)

    # ---- softmax over last dim (single lane-dense-ish writeback) ----
    m = jnp.max(logits, axis=-1, keepdims=True)
    e = jnp.exp(logits - m)
    out_ref[...] = e / jnp.sum(e, axis=-1, keepdims=True)


def wildfire_classifier_forward(x_nchw, params):
    """x_nchw: (B, C, H, W) float32 -> softmax probs, squeezed."""
    b, c, h, w = x_nchw.shape
    hw = h * w
    # NCHW -> (B, C, HW): pure reshape, no transpose / extra HBM round trip.
    x = x_nchw.reshape(b, c, hw)

    (w_enc, b_enc, w1, b1, w2, b2, w3, b3) = params

    vmem = pl.BlockSpec(memory_space=pltpu.MemorySpace.VMEM)

    probs = pl.pallas_call(
        _classifier_kernel,
        out_shape=jax.ShapeDtypeStruct((b, NUM_CLASSES), jnp.float32),
        in_specs=[vmem] * 9,
        out_specs=vmem,
    )(x, w_enc, b_enc, w1, b1, w2, b2, w3, b3)

    # Matches `output.squeeze()` in the PyTorch forward.
    return jnp.squeeze(probs)


def init_params(key):
    ks = jax.random.split(key, 8)

    def lin(kw, kb, fan_in, fan_out):
        bound = 1.0 / jnp.sqrt(fan_in)
        wgt = jax.random.uniform(kw, (fan_in, fan_out), jnp.float32, -bound, bound)
        bia = jax.random.uniform(kb, (1, fan_out), jnp.float32, -bound, bound)
        return wgt, bia

    # Encoder (synthetic 1x1 conv) in (out_ch, in_ch) orientation so the kernel
    # needs no transposes: weight (HIDDEN, C), bias (HIDDEN, 1).
    bound_e = 1.0 / jnp.sqrt(C)
    w_enc = jax.random.uniform(ks[0], (HIDDEN, C), jnp.float32, -bound_e, bound_e)
    b_enc = jax.random.uniform(ks[1], (HIDDEN, 1), jnp.float32, -bound_e, bound_e)

    w1, b1 = lin(ks[2], ks[3], HIDDEN, FC1)
    w2, b2 = lin(ks[4], ks[5], FC1, FC2)
    w3, b3 = lin(ks[6], ks[7], FC2, NUM_CLASSES)
    return (w_enc, b_enc, w1, b1, w2, b2, w3, b3)


if __name__ == "__main__":
    key = jax.random.PRNGKey(0)
    k_x, k_p = jax.random.split(key)
    x = jax.random.normal(k_x, (B, C, H, W), jnp.float32)
    params = init_params(k_p)

    out = wildfire_classifier_forward(x, params)
    out = jax.block_until_ready(out)

    assert out.shape == (B, NUM_CLASSES)
    assert bool(jnp.allclose(jnp.sum(out, axis=-1), 1.0, atol=1e-5))
    print("KERNEL_OK")
</pallas_src>

<mosaic_0001>
module attributes {stable_mosaic.version = 11 : i64} {
  func.func @_classifier_kernel(%arg0: memref<2x4x256xf32, #tpu.memory_space<vmem>>, %arg1: memref<64x4xf32, #tpu.memory_space<vmem>>, %arg2: memref<64x1xf32, #tpu.memory_space<vmem>>, %arg3: memref<64x256xf32, #tpu.memory_space<vmem>>, %arg4: memref<1x256xf32, #tpu.memory_space<vmem>>, %arg5: memref<256x128xf32, #tpu.memory_space<vmem>>, %arg6: memref<1x128xf32, #tpu.memory_space<vmem>>, %arg7: memref<128x2xf32, #tpu.memory_space<vmem>>, %arg8: memref<1x2xf32, #tpu.memory_space<vmem>>, %arg9: memref<2x2xf32, #tpu.memory_space<vmem>>) attributes {dimension_semantics = [], scalar_prefetch = 0 : i64, scratch_operands = 0 : i64, tpu.core_type = #tpu.core_type<tc>} {
    %c0 = arith.constant 0 : index
    %c0_0 = arith.constant 0 : index
    %0 = vector.load %arg1[%c0, %c0_0] : memref<64x4xf32, #tpu.memory_space<vmem>>, vector<64x4xf32>
    %c0_1 = arith.constant 0 : index
    %c0_2 = arith.constant 0 : index
    %1 = vector.load %arg2[%c0_1, %c0_2] : memref<64x1xf32, #tpu.memory_space<vmem>>, vector<64x1xf32>
    %cst = arith.constant 3.906250e-03 : f32
    %2 = vector.broadcast %cst : f32 to vector<1x256xf32>
    %c0_3 = arith.constant 0 : index
    %c0_4 = arith.constant 0 : index
    %c0_5 = arith.constant 0 : index
    %3 = vector.load %arg0[%c0_3, %c0_4, %c0_5] : memref<2x4x256xf32, #tpu.memory_space<vmem>>, vector<1x4x256xf32>
    %4 = vector.shape_cast %3 : vector<1x4x256xf32> to vector<4x256xf32>
    %cst_6 = arith.constant dense<0.000000e+00> : vector<64x256xf32>
    %5 = tpu.matmul %0, %4, %cst_6 {dimension_numbers = #tpu.dot_dimension_numbers<[1], [0], [0], [1], [0, 0, 1, 1], [], []>} : vector<64x4xf32>, vector<4x256xf32>, vector<64x256xf32> -> vector<64x256xf32>
    %6 = vector.broadcast %1 : vector<64x1xf32> to vector<64x256xf32>
    %7 = arith.addf %5, %6 : vector<64x256xf32>
    %cst_7 = arith.constant 0.000000e+00 : f32
    %8 = vector.broadcast %cst_7 : f32 to vector<64x256xf32>
    %9 = arith.maximumf %7, %8 : vector<64x256xf32>
    %cst_8 = arith.constant dense<0.000000e+00> : vector<1x64xf32>
    %10 = tpu.matmul %2, %9, %cst_8 {dimension_numbers = #tpu.dot_dimension_numbers<[1], [1], [0], [0], [0, 0, 1, 0], [], []>} : vector<1x256xf32>, vector<64x256xf32>, vector<1x64xf32> -> vector<1x64xf32>
    %c1 = arith.constant 1 : index
    %c0_9 = arith.constant 0 : index
    %c0_10 = arith.constant 0 : index
    %11 = vector.load %arg0[%c1, %c0_9, %c0_10] : memref<2x4x256xf32, #tpu.memory_space<vmem>>, vector<1x4x256xf32>
    %12 = vector.shape_cast %11 : vector<1x4x256xf32> to vector<4x256xf32>
    %cst_11 = arith.constant dense<0.000000e+00> : vector<64x256xf32>
    %13 = tpu.matmul %0, %12, %cst_11 {dimension_numbers = #tpu.dot_dimension_numbers<[1], [0], [0], [1], [0, 0, 1, 1], [], []>} : vector<64x4xf32>, vector<4x256xf32>, vector<64x256xf32> -> vector<64x256xf32>
    %14 = vector.broadcast %1 : vector<64x1xf32> to vector<64x256xf32>
    %15 = arith.addf %13, %14 : vector<64x256xf32>
    %cst_12 = arith.constant 0.000000e+00 : f32
    %16 = vector.broadcast %cst_12 : f32 to vector<64x256xf32>
    %17 = arith.maximumf %15, %16 : vector<64x256xf32>
    %cst_13 = arith.constant dense<0.000000e+00> : vector<1x64xf32>
    %18 = tpu.matmul %2, %17, %cst_13 {dimension_numbers = #tpu.dot_dimension_numbers<[1], [1], [0], [0], [0, 0, 1, 0], [], []>} : vector<1x256xf32>, vector<64x256xf32>, vector<1x64xf32> -> vector<1x64xf32>
    %19 = tpu.concatenate %10, %18 in 0 : vector<1x64xf32>, vector<1x64xf32> -> vector<2x64xf32>
    %c0_14 = arith.constant 0 : index
    %c0_15 = arith.constant 0 : index
    %20 = vector.load %arg3[%c0_14, %c0_15] : memref<64x256xf32, #tpu.memory_space<vmem>>, vector<64x256xf32>
    %cst_16 = arith.constant dense<0.000000e+00> : vector<2x256xf32>
    %21 = tpu.matmul %19, %20, %cst_16 {dimension_numbers = #tpu.dot_dimension_numbers<[1], [0], [0], [1], [0, 0, 1, 1], [], []>} : vector<2x64xf32>, vector<64x256xf32>, vector<2x256xf32> -> vector<2x256xf32>
    %c0_17 = arith.constant 0 : index
    %c0_18 = arith.constant 0 : index
    %22 = vector.load %arg4[%c0_17, %c0_18] : memref<1x256xf32, #tpu.memory_space<vmem>>, vector<1x256xf32>
    %23 = vector.broadcast %22 : vector<1x256xf32> to vector<2x256xf32>
    %24 = arith.addf %21, %23 : vector<2x256xf32>
    %cst_19 = arith.constant 0.000000e+00 : f32
    %25 = vector.broadcast %cst_19 : f32 to vector<2x256xf32>
    %26 = arith.maximumf %24, %25 : vector<2x256xf32>
    %c0_20 = arith.constant 0 : index
    %c0_21 = arith.constant 0 : index
    %27 = vector.load %arg5[%c0_20, %c0_21] : memref<256x128xf32, #tpu.memory_space<vmem>>, vector<256x128xf32>
    %cst_22 = arith.constant dense<0.000000e+00> : vector<2x128xf32>
    %28 = tpu.matmul %26, %27, %cst_22 {dimension_numbers = #tpu.dot_dimension_numbers<[1], [0], [0], [1], [0, 0, 1, 1], [], []>} : vector<2x256xf32>, vector<256x128xf32>, vector<2x128xf32> -> vector<2x128xf32>
    %c0_23 = arith.constant 0 : index
    %c0_24 = arith.constant 0 : index
    %29 = vector.load %arg6[%c0_23, %c0_24] : memref<1x128xf32, #tpu.memory_space<vmem>>, vector<1x128xf32>
    %30 = vector.broadcast %29 : vector<1x128xf32> to vector<2x128xf32>
    %31 = arith.addf %28, %30 : vector<2x128xf32>
    %cst_25 = arith.constant 0.000000e+00 : f32
    %32 = vector.broadcast %cst_25 : f32 to vector<2x128xf32>
    %33 = arith.maximumf %31, %32 : vector<2x128xf32>
    %c0_26 = arith.constant 0 : index
    %c0_27 = arith.constant 0 : index
    %34 = vector.load %arg7[%c0_26, %c0_27] : memref<128x2xf32, #tpu.memory_space<vmem>>, vector<128x2xf32>
    %cst_28 = arith.constant dense<0.000000e+00> : vector<2x2xf32>
    %35 = tpu.matmul %33, %34, %cst_28 {dimension_numbers = #tpu.dot_dimension_numbers<[1], [0], [0], [1], [0, 0, 1, 1], [], []>} : vector<2x128xf32>, vector<128x2xf32>, vector<2x2xf32> -> vector<2x2xf32>
    %c0_29 = arith.constant 0 : index
    %c0_30 = arith.constant 0 : index
    %36 = vector.load %arg8[%c0_29, %c0_30] : memref<1x2xf32, #tpu.memory_space<vmem>>, vector<1x2xf32>
    %37 = vector.broadcast %36 : vector<1x2xf32> to vector<2x2xf32>
    %38 = arith.addf %35, %37 : vector<2x2xf32>
    %cst_31 = arith.constant dense<0xFF800000> : vector<2xf32>
    %39 = vector.multi_reduction <maximumf>, %38, %cst_31 [1] : vector<2x2xf32> to vector<2xf32>
    %40 = vector.shape_cast %39 : vector<2xf32> to vector<2x1xf32>
    %41 = vector.broadcast %40 : vector<2x1xf32> to vector<2x2xf32>
    %42 = arith.subf %38, %41 : vector<2x2xf32>
    %43 = math.exp %42 : vector<2x2xf32>
    %cst_32 = arith.constant dense<0.000000e+00> : vector<2xf32>
    %44 = vector.multi_reduction <add>, %43, %cst_32 [1] : vector<2x2xf32> to vector<2xf32>
    %45 = vector.shape_cast %44 : vector<2xf32> to vector<2x1xf32>
    %46 = vector.broadcast %45 : vector<2x1xf32> to vector<2x2xf32>
    %47 = arith.divf %43, %46 : vector<2x2xf32>
    %c0_33 = arith.constant 0 : index
    %c0_34 = arith.constant 0 : index
    %48 = vector.load %arg9[%c0_33, %c0_34] : memref<2x2xf32, #tpu.memory_space<vmem>>, vector<2x2xf32>
    tpu.vector_store %arg9[%c0_33, %c0_34], %47 {strides = array<i32>} : memref<2x2xf32, #tpu.memory_space<vmem>>, vector<2x2xf32>,
    return
  }
}

</mosaic_0001>

<llo_original>
// kernel: tpu_custom_call.1
$region0: #{tpu_custom_call.1}
  #allocation0 [shape = 'u32[]', space=smem, size = 0x4, offset = 0x4, fixed_abs, tag = 'smem constant byte address 0x4 - core index']
  #allocation1 [shape = 'u32[144,128]{1,0:T(1,128)}', space=vmem, size = 0x12000, scoped, tag = 'internal scratch']
  %s0 = inlined_call_operand.vmem [shape: f32[2,4,256], index: 0, kind: input, shape index: {}]
  %s1 = inlined_call_operand.vmem [shape: f32[64,4], index: 1, kind: input, shape index: {}]
  %s2 = inlined_call_operand.vmem [shape: f32[64,1], index: 2, kind: input, shape index: {}]
  %s3 = inlined_call_operand.hbm [shape: f32[64,256], index: 3, kind: input, shape index: {}]
  %s4 = inlined_call_operand.vmem [shape: f32[1,256], index: 4, kind: input, shape index: {}]
  %s5 = inlined_call_operand.vmem [shape: f32[256,128], index: 5, kind: input, shape index: {}]
  %s6 = inlined_call_operand.vmem [shape: f32[1,128], index: 6, kind: input, shape index: {}]
  %s7 = inlined_call_operand.vmem [shape: f32[128,2], index: 7, kind: input, shape index: {}]
  %s8 = inlined_call_operand.vmem [shape: f32[1,2], index: 8, kind: input, shape index: {}]
  %s9 = inlined_call_operand.hbm [shape: f32[2,2], index: 9, kind: output, shape index: {}]
  %s10 = sld [smem:[#allocation0]]
  $region50: #{tpu_custom_call.1} parent=0
    _
  %s12 = ssub.s32 1, %s10
  %s13 = scalar_select 0, %s12, %s10
  $region1: #{tpu_custom_call.1} parent=0
    #allocation2 [shape = 'u8[65536]{0}', space=vmem, size = 0x10000, scoped, tag = 'input window, operand 3, single buffered']
    #allocation3 [shape = 's32[1]{0}', space=sflag, size = 0x4, scoped, tag = 'scoped memory for tpu_custom_call.1']
    #allocation4 [shape = 's32[1]{0}', space=sflag, size = 0x4, scoped, tag = 'scoped memory for tpu_custom_call.1']
    #allocation5 [shape = 'u8[1024]{0}', space=vmem, size = 0x400, scoped, tag = 'output window, operand 0, single buffered']
    %14 = vsyncpa [#allocation3], 0
    %15 = vsyncpa [#allocation4], 0
    // Predicated region
    $region2: #{tpu_custom_call.1} parent=1 // pred_check
      _
    $region3: #{tpu_custom_call.1} parent=1 // pred_check_branch
      %17 = sbr.rel (0) target = $region5
    $region4: #{tpu_custom_call.1} parent=1 // pred_region
      _
    $region5: #{tpu_custom_call.1} parent=1 // pred_fallthru
      _
    // Predicated region
    $region6: #{tpu_custom_call.1} parent=1 // pred_check
      _
    $region7: #{tpu_custom_call.1} parent=1 // pred_check_branch
      %19 = sbr.rel (0) target = $region9
    $region8: #{tpu_custom_call.1} parent=1 // pred_region
      _
    $region9: #{tpu_custom_call.1} parent=1 // pred_fallthru
      _
    // Predicated region
    $region10: #{tpu_custom_call.1} parent=1 // pred_check
      _
    $region11: #{tpu_custom_call.1} parent=1 // pred_check_branch
      %21 = sbr.rel (0) target = $region13
    $region12: #{tpu_custom_call.1} parent=1 // pred_region
      _
    $region13: #{tpu_custom_call.1} parent=1 // pred_fallthru
      _
    // Predicated region
    $region14: #{tpu_custom_call.1} parent=1 // pred_check
      _
    $region15: #{tpu_custom_call.1} parent=1 // pred_check_branch
      %23 = sbr.rel (0) target = $region17
    $region16: #{tpu_custom_call.1} parent=1 // pred_region
      %s25 = ssub.s32 2048, 2048
      %26 = vsyncadd [#allocation3], %s25
      %s27 = sshll.u32 [#allocation2], 4
      %s28 = int_to_ptr.vmem [resolvable:$true] %s27
      %33 = dma.hbm_to_vmem [thread:$0]  %s3, 2048, %s28, [#allocation3], 256, 256, 16
    $region17: #{tpu_custom_call.1} parent=1 // pred_fallthru
      _
    // Predicated region
    $region18: #{tpu_custom_call.1} parent=1 // pred_check
      _
    $region19: #{tpu_custom_call.1} parent=1 // pred_check_branch
      %35 = sbr.rel (0) target = $region21
    $region20: #{tpu_custom_call.1} parent=1 // pred_region
      _
    $region21: #{tpu_custom_call.1} parent=1 // pred_fallthru
      _
    // Predicated region
    $region22: #{tpu_custom_call.1} parent=1 // pred_check
      _
    $region23: #{tpu_custom_call.1} parent=1 // pred_check_branch
      %37 = sbr.rel (0) target = $region25
    $region24: #{tpu_custom_call.1} parent=1 // pred_region
      _
    $region25: #{tpu_custom_call.1} parent=1 // pred_fallthru
      _
    // Predicated region
    $region26: #{tpu_custom_call.1} parent=1 // pred_check
      _
    $region27: #{tpu_custom_call.1} parent=1 // pred_check_branch
      %39 = sbr.rel (0) target = $region29
    $region28: #{tpu_custom_call.1} parent=1 // pred_region
      _
    $region29: #{tpu_custom_call.1} parent=1 // pred_fallthru
      _
    // Predicated region
    $region30: #{tpu_custom_call.1} parent=1 // pred_check
      _
    $region31: #{tpu_custom_call.1} parent=1 // pred_check_branch
      %41 = sbr.rel (0) target = $region33
    $region32: #{tpu_custom_call.1} parent=1 // pred_region
      _
    $region33: #{tpu_custom_call.1} parent=1 // pred_fallthru
      _
    // Predicated region
    $region34: #{tpu_custom_call.1} parent=1 // pred_check
      _
    $region35: #{tpu_custom_call.1} parent=1 // pred_check_branch
      %43 = sbr.rel (0) target = $region37
    $region36: #{tpu_custom_call.1} parent=1 // pred_region
      _
    $region37: #{tpu_custom_call.1} parent=1 // pred_fallthru
      _
    // Predicated region
    $region38: #{tpu_custom_call.1} parent=1 // pred_check
      _
    $region39: #{tpu_custom_call.1} parent=1 // pred_check_branch
      %45 = sbr.rel (0) target = $region41
    $region40: #{tpu_custom_call.1} parent=1 // pred_region
      %46 = dma.done [#allocation3], 2048
    $region41: #{tpu_custom_call.1} parent=1 // pred_fallthru
      _
    %v47 = vld [vmem:[%s1] sm:$0xff]
    %v48 = vld [vmem:[%s1 + $0x8] sm:$0xff]
    %v49 = vld [vmem:[%s1 + $0x10] sm:$0xff]
    %v50 = vld [vmem:[%s1 + $0x18] sm:$0xff]
    %v51 = vld [vmem:[%s1 + $0x20] sm:$0xff]
    %v52 = vld [vmem:[%s1 + $0x28] sm:$0xff]
    %v53 = vld [vmem:[%s1 + $0x30] sm:$0xff]
    %v54 = vld [vmem:[%s1 + $0x38] sm:$0xff]
    %v55 = vld [vmem:[%s2] sm:$0xff]
    %v56 = vld [vmem:[%s2 + $0x8] sm:$0xff]
    %v57 = vld [vmem:[%s2 + $0x10] sm:$0xff]
    %v58 = vld [vmem:[%s2 + $0x18] sm:$0xff]
    %v59 = vld [vmem:[%s2 + $0x20] sm:$0xff]
    %v60 = vld [vmem:[%s2 + $0x28] sm:$0xff]
    %v61 = vld [vmem:[%s2 + $0x30] sm:$0xff]
    %v62 = vld [vmem:[%s2 + $0x38] sm:$0xff]
    %v63 = vld [vmem:[%s0] sm:$0xff]
    %65 = vset.pattern.permute.xlu0 0
    %66 = vperm.xlu0 %65, %v55
    %v67 = vpop.permute.xlu0 %66
    %70 = vset.pattern.permute.xlu0 0
    %71 = vperm.xlu0 %70, %v56
    %v72 = vpop.permute.xlu0 %71
    %75 = vset.pattern.permute.xlu0 0
    %76 = vperm.xlu0 %75, %v57
    %v77 = vpop.permute.xlu0 %76
    %80 = vset.pattern.permute.xlu0 0
    %81 = vperm.xlu0 %80, %v58
    %v82 = vpop.permute.xlu0 %81
    %85 = vset.pattern.permute.xlu0 0
    %86 = vperm.xlu0 %85, %v59
    %v87 = vpop.permute.xlu0 %86
    %90 = vset.pattern.permute.xlu0 0
    %91 = vperm.xlu0 %90, %v60
    %v92 = vpop.permute.xlu0 %91
    %95 = vset.pattern.permute.xlu0 0
    %96 = vperm.xlu0 %95, %v61
    %v97 = vpop.permute.xlu0 %96
    %100 = vset.pattern.permute.xlu0 0
    %101 = vperm.xlu0 %100, %v62
    %v102 = vpop.permute.xlu0 %101
    %v105 = vcombine.high %v63, %v63
    %vm106 = vcmask 31744
    %v108 = vsel %vm106, %v47, 0
    %v111 = vsel %vm106, %v48, 0
    %v114 = vsel %vm106, %v49, 0
    %v117 = vsel %vm106, %v50, 0
    %v120 = vsel %vm106, %v51, 0
    %v123 = vsel %vm106, %v52, 0
    %v126 = vsel %vm106, %v53, 0
    %v129 = vsel %vm106, %v54, 0
    %vm131 = vcmask 1043456
    %v132 = vsel %vm131, %v63, 0
    %v134 = vsel %vm131, %v105, 0
    %136 = vmatprep.subr.mxu0 %v134
    %137 = vmatpush1.msra.mxu0 %v132
    %138 = vmatprep.subr.mxu0 0.0
    %139 = vmatpush1.msra.mxu0 0.0
    %140 = vmatprep.subr.mxu0 0.0
    %141 = vmatpush1.msra.mxu0 0.0
    %142 = vmatprep.subr.mxu0 0.0
    %143 = vmatpush1.msra.mxu0 0.0
    %144 = vmatprep.subr.mxu0 0.0
    %145 = vmatpush1.msra.mxu0 0.0
    %146 = vmatprep.subr.mxu0 0.0
    %147 = vmatpush1.msra.mxu0 0.0
    %148 = vmatprep.subr.mxu0 0.0
    %149 = vmatpush1.msra.mxu0 0.0
    %150 = vmatprep.subr.mxu0 0.0
    %151 = vmatpush1.msra.mxu0 0.0
    %152 = vmatprep.subr.mxu0 0.0
    %153 = vmatpush1.msra.mxu0 0.0
    %154 = vmatprep.subr.mxu0 0.0
    %155 = vmatpush1.msra.mxu0 0.0
    %156 = vmatprep.subr.mxu0 0.0
    %157 = vmatpush1.msra.mxu0 0.0
    %158 = vmatprep.subr.mxu0 0.0
    %159 = vmatpush1.msra.mxu0 0.0
    %160 = vmatprep.subr.mxu0 0.0
    %161 = vmatpush1.msra.mxu0 0.0
    %162 = vmatprep.subr.mxu0 0.0
    %163 = vmatpush1.msra.mxu0 0.0
    %164 = vmatprep.subr.mxu0 0.0
    %165 = vmatpush1.msra.mxu0 0.0
    %166 = vmatprep.subr.mxu0 0.0
    %167 = vmatpush1.msra.mxu0 0.0
    %168 = vmatprep.subr.mxu0 0.0
    %169 = vmatpush1.msra.mxu0 0.0
    %170 = vmatprep.subr.mxu0 0.0
    %171 = vmatpush1.msra.mxu0 0.0
    %172 = vmatprep.subr.mxu0 0.0
    %173 = vmatpush1.msra.mxu0 0.0
    %174 = vmatprep.subr.mxu0 0.0
    %175 = vmatpush1.msra.mxu0 0.0
    %176 = vmatprep.subr.mxu0 0.0
    %177 = vmatpush1.msra.mxu0 0.0
    %178 = vmatprep.subr.mxu0 0.0
    %179 = vmatpush1.msra.mxu0 0.0
    %180 = vmatprep.subr.mxu0 0.0
    %181 = vmatpush1.msra.mxu0 0.0
    %182 = vmatprep.subr.mxu0 0.0
    %183 = vmatpush1.msra.mxu0 0.0
    %184 = vmatprep.subr.mxu0 0.0
    %185 = vmatpush1.msra.mxu0 0.0
    %186 = vmatprep.subr.mxu0 0.0
    %187 = vmatpush1.msra.mxu0 0.0
    %188 = vmatprep.subr.mxu0 0.0
    %189 = vmatpush1.msra.mxu0 0.0
    %190 = vmatprep.subr.mxu0 0.0
    %191 = vmatpush1.msra.mxu0 0.0
    %192 = vmatprep.subr.mxu0 0.0
    %193 = vmatpush1.msra.mxu0 0.0
    %194 = vmatprep.subr.mxu0 0.0
    %195 = vmatpush1.msra.mxu0 0.0
    %196 = vmatprep.subr.mxu0 0.0
    %197 = vmatpush1.msra.mxu0 0.0
    %198 = vmatprep.subr.mxu0 0.0
    %199 = vmatpush1.msra.mxu0 0.0
    %200 = vmatprep.mubr.f32.mxu0 0.0
    %201 = vmatmul.mubr.f32.gmra.mrb[0].mxu0 %v108
    %v202 = vpop.f32.mrb[0].mxu0
    %v203 = vadd.f32 %v67, %v202
    %v204 = vpop.f32.mrb[0].mxu0
    %v205 = vadd.f32 %v67, %v204
    %206 = vmatprep.mubr.f32.mxu0 0.0
    %207 = vmatmul.mubr.f32.gmra.mrb[0].mxu0 %v111
    %v208 = vpop.f32.mrb[0].mxu0
    %v209 = vadd.f32 %v72, %v208
    %v210 = vpop.f32.mrb[0].mxu0
    %v211 = vadd.f32 %v72, %v210
    %212 = vmatprep.mubr.f32.mxu0 0.0
    %213 = vmatmul.mubr.f32.gmra.mrb[0].mxu0 %v114
    %v214 = vpop.f32.mrb[0].mxu0
    %v215 = vadd.f32 %v77, %v214
    %v216 = vpop.f32.mrb[0].mxu0
    %v217 = vadd.f32 %v77, %v216
    %218 = vmatprep.mubr.f32.mxu0 0.0
    %219 = vmatmul.mubr.f32.gmra.mrb[0].mxu0 %v117
    %v220 = vpop.f32.mrb[0].mxu0
    %v221 = vadd.f32 %v82, %v220
    %v222 = vpop.f32.mrb[0].mxu0
    %v223 = vadd.f32 %v82, %v222
    %224 = vmatprep.mubr.f32.mxu0 0.0
    %225 = vmatmul.mubr.f32.gmra.mrb[0].mxu0 %v120
    %v226 = vpop.f32.mrb[0].mxu0
    %v227 = vadd.f32 %v87, %v226
    %v228 = vpop.f32.mrb[0].mxu0
    %v229 = vadd.f32 %v87, %v228
    %230 = vmatprep.mubr.f32.mxu0 0.0
    %231 = vmatmul.mubr.f32.gmra.mrb[0].mxu0 %v123
    %v232 = vpop.f32.mrb[0].mxu0
    %v233 = vadd.f32 %v92, %v232
    %v234 = vpop.f32.mrb[0].mxu0
    %v235 = vadd.f32 %v92, %v234
    %236 = vmatprep.mubr.f32.mxu0 0.0
    %237 = vmatmul.mubr.f32.gmra.mrb[0].mxu0 %v126
    %v238 = vpop.f32.mrb[0].mxu0
    %v239 = vadd.f32 %v97, %v238
    %v240 = vpop.f32.mrb[0].mxu0
    %v241 = vadd.f32 %v97, %v240
    %242 = vmatprep.mubr.f32.mxu0 0.0
    %243 = vmatmul.mubr.f32.gmra.mrb[0].mxu0 %v129
    %v244 = vpop.f32.mrb[0].mxu0
    %v245 = vadd.f32 %v102, %v244
    %v246 = vpop.f32.mrb[0].mxu0
    %v247 = vadd.f32 %v102, %v246
    %248 = vdwg.mxu0
    %v249 = vmax.f32 %v203, 0.0
    %v250 = vmax.f32 %v205, 0.0
    %v251 = vmax.f32 %v209, 0.0
    %v252 = vmax.f32 %v211, 0.0
    %v253 = vmax.f32 %v215, 0.0
    %v254 = vmax.f32 %v217, 0.0
    %v255 = vmax.f32 %v221, 0.0
    %v256 = vmax.f32 %v223, 0.0
    %v257 = vmax.f32 %v227, 0.0
    %v258 = vmax.f32 %v229, 0.0
    %v259 = vmax.f32 %v233, 0.0
    %v260 = vmax.f32 %v235, 0.0
    %v261 = vmax.f32 %v239, 0.0
    %v262 = vmax.f32 %v241, 0.0
    %v263 = vmax.f32 %v245, 0.0
    %v264 = vmax.f32 %v247, 0.0
    %265 = vmatprep.subr.mxu0 %v250
    %266 = vmatpush1.xpose.msra.mxu0 %v249
    %267 = vmatprep.subr.mxu0 %v252
    %268 = vmatpush1.xpose.msra.mxu0 %v251
    %269 = vmatprep.subr.mxu0 %v254
    %270 = vmatpush1.xpose.msra.mxu0 %v253
    %271 = vmatprep.subr.mxu0 %v256
    %272 = vmatpush1.xpose.msra.mxu0 %v255
    %273 = vmatprep.subr.mxu0 %v258
    %274 = vmatpush1.xpose.msra.mxu0 %v257
    %275 = vmatprep.subr.mxu0 %v260
    %276 = vmatpush1.xpose.msra.mxu0 %v259
    %277 = vmatprep.subr.mxu0 %v262
    %278 = vmatpush1.xpose.msra.mxu0 %v261
    %279 = vmatprep.subr.mxu0 %v264
    %280 = vmatpush1.xpose.msra.mxu0 %v263
    %281 = vmatprep.subr.mxu0 0.0
    %282 = vmatpush1.xpose.msra.mxu0 0.0
    %283 = vmatprep.subr.mxu0 0.0
    %284 = vmatpush1.xpose.msra.mxu0 0.0
    %285 = vmatprep.subr.mxu0 0.0
    %286 = vmatpush1.xpose.msra.mxu0 0.0
    %287 = vmatprep.subr.mxu0 0.0
    %288 = vmatpush1.xpose.msra.mxu0 0.0
    %289 = vmatprep.subr.mxu0 0.0
    %290 = vmatpush1.xpose.msra.mxu0 0.0
    %291 = vmatprep.subr.mxu0 0.0
    %292 = vmatpush1.xpose.msra.mxu0 0.0
    %293 = vmatprep.subr.mxu0 0.0
    %294 = vmatpush1.xpose.msra.mxu0 0.0
    %295 = vmatprep.subr.mxu0 0.0
    %296 = vmatpush1.xpose.msra.mxu0 0.0
    %297 = vmatprep.subr.mxu0 0.0
    %298 = vmatpush1.xpose.msra.mxu0 0.0
    %299 = vmatprep.subr.mxu0 0.0
    %300 = vmatpush1.xpose.msra.mxu0 0.0
    %301 = vmatprep.subr.mxu0 0.0
    %302 = vmatpush1.xpose.msra.mxu0 0.0
    %303 = vmatprep.subr.mxu0 0.0
    %304 = vmatpush1.xpose.msra.mxu0 0.0
    %305 = vmatprep.subr.mxu0 0.0
    %306 = vmatpush1.xpose.msra.mxu0 0.0
    %307 = vmatprep.subr.mxu0 0.0
    %308 = vmatpush1.xpose.msra.mxu0 0.0
    %309 = vmatprep.subr.mxu0 0.0
    %310 = vmatpush1.xpose.msra.mxu0 0.0
    %311 = vmatprep.subr.mxu0 0.0
    %312 = vmatpush1.xpose.msra.mxu0 0.0
    %313 = vmatprep.subr.mxu0 0.0
    %314 = vmatpush1.xpose.msra.mxu0 0.0
    %315 = vmatprep.subr.mxu0 0.0
    %316 = vmatpush1.xpose.msra.mxu0 0.0
    %317 = vmatprep.subr.mxu0 0.0
    %318 = vmatpush1.xpose.msra.mxu0 0.0
    %319 = vmatprep.subr.mxu0 0.0
    %320 = vmatpush1.xpose.msra.mxu0 0.0
    %321 = vmatprep.subr.mxu0 0.0
    %322 = vmatpush1.xpose.msra.mxu0 0.0
    %323 = vmatprep.subr.mxu0 0.0
    %324 = vmatpush1.xpose.msra.mxu0 0.0
    %325 = vmatprep.subr.mxu0 0.0
    %326 = vmatpush1.xpose.msra.mxu0 0.0
    %327 = vmatprep.subr.mxu0 0.0
    %328 = vmatpush1.xpose.msra.mxu0 0.0
    %329 = vmatprep.mubr.f32.mxu0 0.00390625
    %330 = vmatmul.mubr.f32.gmra.mrb[0].mxu0 0.00390625
    %v331 = vpop.f32.mrb[0].mxu0
    %v332 = vadd.f32 0.0, %v331
    %v333 = vpop.f32.mrb[0].mxu0
    %334 = vdwg.mxu0
    %s335 = scalar_lea.vmem %s0, 8
    %v336 = vld [vmem:[%s335] sm:$0xff]
    %v338 = vcombine.high %v336, %v336
    %v339 = vsel %vm131, %v336, 0
    %v341 = vsel %vm131, %v338, 0
    %343 = vmatprep.subr.mxu0 %v341
    %344 = vmatpush1.msra.mxu0 %v339
    %345 = vmatprep.subr.mxu0 0.0
    %346 = vmatpush1.msra.mxu0 0.0
    %347 = vmatprep.subr.mxu0 0.0
    %348 = vmatpush1.msra.mxu0 0.0
    %349 = vmatprep.subr.mxu0 0.0
    %350 = vmatpush1.msra.mxu0 0.0
    %351 = vmatprep.subr.mxu0 0.0
    %352 = vmatpush1.msra.mxu0 0.0
    %353 = vmatprep.subr.mxu0 0.0
    %354 = vmatpush1.msra.mxu0 0.0
    %355 = vmatprep.subr.mxu0 0.0
    %356 = vmatpush1.msra.mxu0 0.0
    %357 = vmatprep.subr.mxu0 0.0
    %358 = vmatpush1.msra.mxu0 0.0
    %359 = vmatprep.subr.mxu0 0.0
    %360 = vmatpush1.msra.mxu0 0.0
    %361 = vmatprep.subr.mxu0 0.0
    %362 = vmatpush1.msra.mxu0 0.0
    %363 = vmatprep.subr.mxu0 0.0
    %364 = vmatpush1.msra.mxu0 0.0
    %365 = vmatprep.subr.mxu0 0.0
    %366 = vmatpush1.msra.mxu0 0.0
    %367 = vmatprep.subr.mxu0 0.0
    %368 = vmatpush1.msra.mxu0 0.0
    %369 = vmatprep.subr.mxu0 0.0
    %370 = vmatpush1.msra.mxu0 0.0
    %371 = vmatprep.subr.mxu0 0.0
    %372 = vmatpush1.msra.mxu0 0.0
    %373 = vmatprep.subr.mxu0 0.0
    %374 = vmatpush1.msra.mxu0 0.0
    %375 = vmatprep.subr.mxu0 0.0
    %376 = vmatpush1.msra.mxu0 0.0
    %377 = vmatprep.subr.mxu0 0.0
    %378 = vmatpush1.msra.mxu0 0.0
    %379 = vmatprep.subr.mxu0 0.0
    %380 = vmatpush1.msra.mxu0 0.0
    %381 = vmatprep.subr.mxu0 0.0
    %382 = vmatpush1.msra.mxu0 0.0
    %383 = vmatprep.subr.mxu0 0.0
    %384 = vmatpush1.msra.mxu0 0.0
    %385 = vmatprep.subr.mxu0 0.0
    %386 = vmatpush1.msra.mxu0 0.0
    %387 = vmatprep.subr.mxu0 0.0
    %388 = vmatpush1.msra.mxu0 0.0
    %389 = vmatprep.subr.mxu0 0.0
    %390 = vmatpush1.msra.mxu0 0.0
    %391 = vmatprep.subr.mxu0 0.0
    %392 = vmatpush1.msra.mxu0 0.0
    %393 = vmatprep.subr.mxu0 0.0
    %394 = vmatpush1.msra.mxu0 0.0
    %395 = vmatprep.subr.mxu0 0.0
    %396 = vmatpush1.msra.mxu0 0.0
    %397 = vmatprep.subr.mxu0 0.0
    %398 = vmatpush1.msra.mxu0 0.0
    %399 = vmatprep.subr.mxu0 0.0
    %400 = vmatpush1.msra.mxu0 0.0
    %401 = vmatprep.subr.mxu0 0.0
    %402 = vmatpush1.msra.mxu0 0.0
    %403 = vmatprep.subr.mxu0 0.0
    %404 = vmatpush1.msra.mxu0 0.0
    %405 = vmatprep.subr.mxu0 0.0
    %406 = vmatpush1.msra.mxu0 0.0
    %407 = vmatprep.mubr.f32.mxu0 0.0
    %408 = vmatmul.mubr.f32.gmra.mrb[0].mxu0 %v108
    %v409 = vpop.f32.mrb[0].mxu0
    %v410 = vadd.f32 %v67, %v409
    %v411 = vpop.f32.mrb[0].mxu0
    %v412 = vadd.f32 %v67, %v411
    %413 = vmatprep.mubr.f32.mxu0 0.0
    %414 = vmatmul.mubr.f32.gmra.mrb[0].mxu0 %v111
    %v415 = vpop.f32.mrb[0].mxu0
    %v416 = vadd.f32 %v72, %v415
    %v417 = vpop.f32.mrb[0].mxu0
    %v418 = vadd.f32 %v72, %v417
    %419 = vmatprep.mubr.f32.mxu0 0.0
    %420 = vmatmul.mubr.f32.gmra.mrb[0].mxu0 %v114
    %v421 = vpop.f32.mrb[0].mxu0
    %v422 = vadd.f32 %v77, %v421
    %v423 = vpop.f32.mrb[0].mxu0
    %v424 = vadd.f32 %v77, %v423
    %425 = vmatprep.mubr.f32.mxu0 0.0
    %426 = vmatmul.mubr.f32.gmra.mrb[0].mxu0 %v117
    %v427 = vpop.f32.mrb[0].mxu0
    %v428 = vadd.f32 %v82, %v427
    %v429 = vpop.f32.mrb[0].mxu0
    %v430 = vadd.f32 %v82, %v429
    %431 = vmatprep.mubr.f32.mxu0 0.0
    %432 = vmatmul.mubr.f32.gmra.mrb[0].mxu0 %v120
    %v433 = vpop.f32.mrb[0].mxu0
    %v434 = vadd.f32 %v87, %v433
    %v435 = vpop.f32.mrb[0].mxu0
    %v436 = vadd.f32 %v87, %v435
    %437 = vmatprep.mubr.f32.mxu0 0.0
    %438 = vmatmul.mubr.f32.gmra.mrb[0].mxu0 %v123
    %v439 = vpop.f32.mrb[0].mxu0
    %v440 = vadd.f32 %v92, %v439
    %v441 = vpop.f32.mrb[0].mxu0
    %v442 = vadd.f32 %v92, %v441
    %443 = vmatprep.mubr.f32.mxu0 0.0
    %444 = vmatmul.mubr.f32.gmra.mrb[0].mxu0 %v126
    %v445 = vpop.f32.mrb[0].mxu0
    %v446 = vadd.f32 %v97, %v445
    %v447 = vpop.f32.mrb[0].mxu0
    %v448 = vadd.f32 %v97, %v447
    %449 = vmatprep.mubr.f32.mxu0 0.0
    %450 = vmatmul.mubr.f32.gmra.mrb[0].mxu0 %v129
    %v451 = vpop.f32.mrb[0].mxu0
    %v452 = vadd.f32 %v102, %v451
    %v453 = vpop.f32.mrb[0].mxu0
    %v454 = vadd.f32 %v102, %v453
    %455 = vdwg.mxu0
    %v456 = vmax.f32 %v410, 0.0
    %v457 = vmax.f32 %v412, 0.0
    %v458 = vmax.f32 %v416, 0.0
    %v459 = vmax.f32 %v418, 0.0
    %v460 = vmax.f32 %v422, 0.0
    %v461 = vmax.f32 %v424, 0.0
    %v462 = vmax.f32 %v428, 0.0
    %v463 = vmax.f32 %v430, 0.0
    %v464 = vmax.f32 %v434, 0.0
    %v465 = vmax.f32 %v436, 0.0
    %v466 = vmax.f32 %v440, 0.0
    %v467 = vmax.f32 %v442, 0.0
    %v468 = vmax.f32 %v446, 0.0
    %v469 = vmax.f32 %v448, 0.0
    %v470 = vmax.f32 %v452, 0.0
    %v471 = vmax.f32 %v454, 0.0
    %472 = vmatprep.subr.mxu0 %v457
    %473 = vmatpush1.xpose.msra.mxu0 %v456
    %474 = vmatprep.subr.mxu0 %v459
    %475 = vmatpush1.xpose.msra.mxu0 %v458
    %476 = vmatprep.subr.mxu0 %v461
    %477 = vmatpush1.xpose.msra.mxu0 %v460
    %478 = vmatprep.subr.mxu0 %v463
    %479 = vmatpush1.xpose.msra.mxu0 %v462
    %480 = vmatprep.subr.mxu0 %v465
    %481 = vmatpush1.xpose.msra.mxu0 %v464
    %482 = vmatprep.subr.mxu0 %v467
    %483 = vmatpush1.xpose.msra.mxu0 %v466
    %484 = vmatprep.subr.mxu0 %v469
    %485 = vmatpush1.xpose.msra.mxu0 %v468
    %486 = vmatprep.subr.mxu0 %v471
    %487 = vmatpush1.xpose.msra.mxu0 %v470
    %488 = vmatprep.subr.mxu0 0.0
    %489 = vmatpush1.xpose.msra.mxu0 0.0
    %490 = vmatprep.subr.mxu0 0.0
    %491 = vmatpush1.xpose.msra.mxu0 0.0
    %492 = vmatprep.subr.mxu0 0.0
    %493 = vmatpush1.xpose.msra.mxu0 0.0
    %494 = vmatprep.subr.mxu0 0.0
    %495 = vmatpush1.xpose.msra.mxu0 0.0
    %496 = vmatprep.subr.mxu0 0.0
    %497 = vmatpush1.xpose.msra.mxu0 0.0
    %498 = vmatprep.subr.mxu0 0.0
    %499 = vmatpush1.xpose.msra.mxu0 0.0
    %500 = vmatprep.subr.mxu0 0.0
    %501 = vmatpush1.xpose.msra.mxu0 0.0
    %502 = vmatprep.subr.mxu0 0.0
    %503 = vmatpush1.xpose.msra.mxu0 0.0
    %504 = vmatprep.subr.mxu0 0.0
    %505 = vmatpush1.xpose.msra.mxu0 0.0
    %506 = vmatprep.subr.mxu0 0.0
    %507 = vmatpush1.xpose.msra.mxu0 0.0
    %508 = vmatprep.subr.mxu0 0.0
    %509 = vmatpush1.xpose.msra.mxu0 0.0
    %510 = vmatprep.subr.mxu0 0.0
    %511 = vmatpush1.xpose.msra.mxu0 0.0
    %512 = vmatprep.subr.mxu0 0.0
    %513 = vmatpush1.xpose.msra.mxu0 0.0
    %514 = vmatprep.subr.mxu0 0.0
    %515 = vmatpush1.xpose.msra.mxu0 0.0
    %516 = vmatprep.subr.mxu0 0.0
    %517 = vmatpush1.xpose.msra.mxu0 0.0
    %518 = vmatprep.subr.mxu0 0.0
    %519 = vmatpush1.xpose.msra.mxu0 0.0
    %520 = vmatprep.subr.mxu0 0.0
    %521 = vmatpush1.xpose.msra.mxu0 0.0
    %522 = vmatprep.subr.mxu0 0.0
    %523 = vmatpush1.xpose.msra.mxu0 0.0
    %524 = vmatprep.subr.mxu0 0.0
    %525 = vmatpush1.xpose.msra.mxu0 0.0
    %526 = vmatprep.subr.mxu0 0.0
    %527 = vmatpush1.xpose.msra.mxu0 0.0
    %528 = vmatprep.subr.mxu0 0.0
    %529 = vmatpush1.xpose.msra.mxu0 0.0
    %530 = vmatprep.subr.mxu0 0.0
    %531 = vmatpush1.xpose.msra.mxu0 0.0
    %532 = vmatprep.subr.mxu0 0.0
    %533 = vmatpush1.xpose.msra.mxu0 0.0
    %534 = vmatprep.subr.mxu0 0.0
    %535 = vmatpush1.xpose.msra.mxu0 0.0
    %536 = vmatprep.mubr.f32.mxu0 0.00390625
    %537 = vmatmul.mubr.f32.gmra.mrb[0].mxu0 0.00390625
    %v538 = vpop.f32.mrb[0].mxu0
    %v539 = vadd.f32 0.0, %v538
    %v540 = vpop.f32.mrb[0].mxu0
    %541 = vdwg.mxu0
    %v543 = vrot.slane %v539, 7
    %vm545 = vcmask 1040384
    %v546 = vsel %vm545, %v332, %v543
    %v547 = vld [vmem:[#allocation2] sm:$0xff]
    %v548 = vld [vmem:[#allocation2 + $0x8] sm:$0xff]
    %v549 = vld [vmem:[#allocation2 + $0x10] sm:$0xff]
    %v550 = vld [vmem:[#allocation2 + $0x18] sm:$0xff]
    %v551 = vld [vmem:[#allocation2 + $0x20] sm:$0xff]
    %v552 = vld [vmem:[#allocation2 + $0x28] sm:$0xff]
    %v553 = vld [vmem:[#allocation2 + $0x30] sm:$0xff]
    %v554 = vld [vmem:[#allocation2 + $0x38] sm:$0xff]
    %v555 = vld [vmem:[#allocation2 + $0x40] sm:$0xff]
    %v556 = vld [vmem:[#allocation2 + $0x48] sm:$0xff]
    %v557 = vld [vmem:[#allocation2 + $0x50] sm:$0xff]
    %v558 = vld [vmem:[#allocation2 + $0x58] sm:$0xff]
    %v559 = vld [vmem:[#allocation2 + $0x60] sm:$0xff]
    %v560 = vld [vmem:[#allocation2 + $0x68] sm:$0xff]
    %v561 = vld [vmem:[#allocation2 + $0x70] sm:$0xff]
    %v562 = vld [vmem:[#allocation2 + $0x78] sm:$0xff]
    %v563 = vld [vmem:[%s4] sm:$0x3]
    %v565 = vlaneseq
    %v566 = vshrl.u32 %v565, 7
    %v567 = vsub.s32 0, %v566
    %v568 = vrot.slane %v563, %v567
    %v569 = vlaneseq
    %v570 = vshrl.u32 %v569, 7
    %v571 = vsub.s32 1, %v570
    %v572 = vrot.slane %v563, %v571
    %vm575 = vcmask 523264
    %v577 = vsel %vm575, %v546, 0
    %579 = vmatprep.subr.mxu0 %v548
    %580 = vmatpush1.msra.mxu0 %v547
    %581 = vmatprep.subr.mxu0 %v550
    %582 = vmatpush1.msra.mxu0 %v549
    %583 = vmatprep.subr.mxu0 %v552
    %584 = vmatpush1.msra.mxu0 %v551
    %585 = vmatprep.subr.mxu0 %v554
    %586 = vmatpush1.msra.mxu0 %v553
    %587 = vmatprep.subr.mxu0 %v556
    %588 = vmatpush1.msra.mxu0 %v555
    %589 = vmatprep.subr.mxu0 %v558
    %590 = vmatpush1.msra.mxu0 %v557
    %591 = vmatprep.subr.mxu0 %v560
    %592 = vmatpush1.msra.mxu0 %v559
    %593 = vmatprep.subr.mxu0 %v562
    %594 = vmatpush1.msra.mxu0 %v561
    %595 = vmatprep.subr.mxu0 0.0
    %596 = vmatpush1.msra.mxu0 0.0
    %597 = vmatprep.subr.mxu0 0.0
    %598 = vmatpush1.msra.mxu0 0.0
    %599 = vmatprep.subr.mxu0 0.0
    %600 = vmatpush1.msra.mxu0 0.0
    %601 = vmatprep.subr.mxu0 0.0
    %602 = vmatpush1.msra.mxu0 0.0
    %603 = vmatprep.subr.mxu0 0.0
    %604 = vmatpush1.msra.mxu0 0.0
    %605 = vmatprep.subr.mxu0 0.0
    %606 = vmatpush1.msra.mxu0 0.0
    %607 = vmatprep.subr.mxu0 0.0
    %608 = vmatpush1.msra.mxu0 0.0
    %609 = vmatprep.subr.mxu0 0.0
    %610 = vmatpush1.msra.mxu0 0.0
    %611 = vmatprep.subr.mxu0 0.0
    %612 = vmatpush1.msra.mxu0 0.0
    %613 = vmatprep.subr.mxu0 0.0
    %614 = vmatpush1.msra.mxu0 0.0
    %615 = vmatprep.subr.mxu0 0.0
    %616 = vmatpush1.msra.mxu0 0.0
    %617 = vmatprep.subr.mxu0 0.0
    %618 = vmatpush1.msra.mxu0 0.0
    %619 = vmatprep.subr.mxu0 0.0
    %620 = vmatpush1.msra.mxu0 0.0
    %621 = vmatprep.subr.mxu0 0.0
    %622 = vmatpush1.msra.mxu0 0.0
    %623 = vmatprep.subr.mxu0 0.0
    %624 = vmatpush1.msra.mxu0 0.0
    %625 = vmatprep.subr.mxu0 0.0
    %626 = vmatpush1.msra.mxu0 0.0
    %627 = vmatprep.subr.mxu0 0.0
    %628 = vmatpush1.msra.mxu0 0.0
    %629 = vmatprep.subr.mxu0 0.0
    %630 = vmatpush1.msra.mxu0 0.0
    %631 = vmatprep.subr.mxu0 0.0
    %632 = vmatpush1.msra.mxu0 0.0
    %633 = vmatprep.subr.mxu0 0.0
    %634 = vmatpush1.msra.mxu0 0.0
    %635 = vmatprep.subr.mxu0 0.0
    %636 = vmatpush1.msra.mxu0 0.0
    %637 = vmatprep.subr.mxu0 0.0
    %638 = vmatpush1.msra.mxu0 0.0
    %639 = vmatprep.subr.mxu0 0.0
    %640 = vmatpush1.msra.mxu0 0.0
    %641 = vmatprep.subr.mxu0 0.0
    %642 = vmatpush1.msra.mxu0 0.0
    %643 = vmatprep.mubr.f32.mxu0 0.0
    %644 = vmatmul.mubr.f32.gmra.mrb[0].mxu0 %v577
    %v645 = vpop.f32.mrb[0].mxu0
    %v646 = vadd.f32 %v568, %v645
    %v647 = vpop.f32.mrb[0].mxu0
    %v648 = vadd.f32 %v572, %v647
    %649 = vdwg.mxu0
    %v650 = vmax.f32 %v646, 0.0
    %v651 = vmax.f32 %v648, 0.0
    %v652 = vld [vmem:[%s5] sm:$0xff]
    %v653 = vld [vmem:[%s5 + $0x8] sm:$0xff]
    %v654 = vld [vmem:[%s5 + $0x10] sm:$0xff]
    %v655 = vld [vmem:[%s5 + $0x18] sm:$0xff]
    %v656 = vld [vmem:[%s5 + $0x20] sm:$0xff]
    %v657 = vld [vmem:[%s5 + $0x28] sm:$0xff]
    %v658 = vld [vmem:[%s5 + $0x30] sm:$0xff]
    %v659 = vld [vmem:[%s5 + $0x38] sm:$0xff]
    %v660 = vld [vmem:[%s5 + $0x40] sm:$0xff]
    %v661 = vld [vmem:[%s5 + $0x48] sm:$0xff]
    %v662 = vld [vmem:[%s5 + $0x50] sm:$0xff]
    %v663 = vld [vmem:[%s5 + $0x58] sm:$0xff]
    %v664 = vld [vmem:[%s5 + $0x60] sm:$0xff]
    %v665 = vld [vmem:[%s5 + $0x68] sm:$0xff]
    %v666 = vld [vmem:[%s5 + $0x70] sm:$0xff]
    %v667 = vld [vmem:[%s5 + $0x78] sm:$0xff]
    %v668 = vld [vmem:[%s5 + $0x80] sm:$0xff]
    %v669 = vld [vmem:[%s5 + $0x88] sm:$0xff]
    %v670 = vld [vmem:[%s5 + $0x90] sm:$0xff]
    %v671 = vld [vmem:[%s5 + $0x98] sm:$0xff]
    %v672 = vld [vmem:[%s5 + $0xa0] sm:$0xff]
    %v673 = vld [vmem:[%s5 + $0xa8] sm:$0xff]
    %v674 = vld [vmem:[%s5 + $0xb0] sm:$0xff]
    %v675 = vld [vmem:[%s5 + $0xb8] sm:$0xff]
    %v676 = vld [vmem:[%s5 + $0xc0] sm:$0xff]
    %v677 = vld [vmem:[%s5 + $0xc8] sm:$0xff]
    %v678 = vld [vmem:[%s5 + $0xd0] sm:$0xff]
    %v679 = vld [vmem:[%s5 + $0xd8] sm:$0xff]
    %v680 = vld [vmem:[%s5 + $0xe0] sm:$0xff]
    %v681 = vld [vmem:[%s5 + $0xe8] sm:$0xff]
    %v682 = vld [vmem:[%s5 + $0xf0] sm:$0xff]
    %v683 = vld [vmem:[%s5 + $0xf8] sm:$0xff]
    %v684 = vld [vmem:[%s6] sm:$0x1]
    %v686 = vlaneseq
    %v687 = vshrl.u32 %v686, 7
    %v688 = vsub.s32 0, %v687
    %v689 = vrot.slane %v684, %v688
    %691 = vmatprep.subr.mxu0 0.0
    %692 = vmatpush1.msra.mxu0 %v652
    %693 = vmatprep.subr.mxu0 0.0
    %694 = vmatpush1.msra.mxu0 %v653
    %695 = vmatprep.subr.mxu0 0.0
    %696 = vmatpush1.msra.mxu0 %v654
    %697 = vmatprep.subr.mxu0 0.0
    %698 = vmatpush1.msra.mxu0 %v655
    %699 = vmatprep.subr.mxu0 0.0
    %700 = vmatpush1.msra.mxu0 %v656
    %701 = vmatprep.subr.mxu0 0.0
    %702 = vmatpush1.msra.mxu0 %v657
    %703 = vmatprep.subr.mxu0 0.0
    %704 = vmatpush1.msra.mxu0 %v658
    %705 = vmatprep.subr.mxu0 0.0
    %706 = vmatpush1.msra.mxu0 %v659
    %707 = vmatprep.subr.mxu0 0.0
    %708 = vmatpush1.msra.mxu0 %v660
    %709 = vmatprep.subr.mxu0 0.0
    %710 = vmatpush1.msra.mxu0 %v661
    %711 = vmatprep.subr.mxu0 0.0
    %712 = vmatpush1.msra.mxu0 %v662
    %713 = vmatprep.subr.mxu0 0.0
    %714 = vmatpush1.msra.mxu0 %v663
    %715 = vmatprep.subr.mxu0 0.0
    %716 = vmatpush1.msra.mxu0 %v664
    %717 = vmatprep.subr.mxu0 0.0
    %718 = vmatpush1.msra.mxu0 %v665
    %719 = vmatprep.subr.mxu0 0.0
    %720 = vmatpush1.msra.mxu0 %v666
    %721 = vmatprep.subr.mxu0 0.0
    %722 = vmatpush1.msra.mxu0 %v667
    %723 = vmatprep.subr.mxu0 0.0
    %724 = vmatpush1.msra.mxu0 %v668
    %725 = vmatprep.subr.mxu0 0.0
    %726 = vmatpush1.msra.mxu0 %v669
    %727 = vmatprep.subr.mxu0 0.0
    %728 = vmatpush1.msra.mxu0 %v670
    %729 = vmatprep.subr.mxu0 0.0
    %730 = vmatpush1.msra.mxu0 %v671
    %731 = vmatprep.subr.mxu0 0.0
    %732 = vmatpush1.msra.mxu0 %v672
    %733 = vmatprep.subr.mxu0 0.0
    %734 = vmatpush1.msra.mxu0 %v673
    %735 = vmatprep.subr.mxu0 0.0
    %736 = vmatpush1.msra.mxu0 %v674
    %737 = vmatprep.subr.mxu0 0.0
    %738 = vmatpush1.msra.mxu0 %v675
    %739 = vmatprep.subr.mxu0 0.0
    %740 = vmatpush1.msra.mxu0 %v676
    %741 = vmatprep.subr.mxu0 0.0
    %742 = vmatpush1.msra.mxu0 %v677
    %743 = vmatprep.subr.mxu0 0.0
    %744 = vmatpush1.msra.mxu0 %v678
    %745 = vmatprep.subr.mxu0 0.0
    %746 = vmatpush1.msra.mxu0 %v679
    %747 = vmatprep.subr.mxu0 0.0
    %748 = vmatpush1.msra.mxu0 %v680
    %749 = vmatprep.subr.mxu0 0.0
    %750 = vmatpush1.msra.mxu0 %v681
    %751 = vmatprep.subr.mxu0 0.0
    %752 = vmatpush1.msra.mxu0 %v682
    %753 = vmatprep.subr.mxu0 0.0
    %754 = vmatpush1.msra.mxu0 %v683
    %755 = vmatprep.mubr.f32.mxu0 %v651
    %756 = vmatmul.mubr.f32.gmra.mrb[0].mxu0 %v650
    %v757 = vpop.f32.mrb[0].mxu0
    %v758 = vadd.f32 %v689, %v757
    %v759 = vpop.f32.mrb[0].mxu0
    %760 = vdwg.mxu0
    %v761 = vmax.f32 %v758, 0.0
    %v762 = vld [vmem:[%s7] sm:$0xff]
    %v763 = vld [vmem:[%s7 + $0x8] sm:$0xff]
    %v764 = vld [vmem:[%s7 + $0x10] sm:$0xff]
    %v765 = vld [vmem:[%s7 + $0x18] sm:$0xff]
    %v766 = vld [vmem:[%s7 + $0x20] sm:$0xff]
    %v767 = vld [vmem:[%s7 + $0x28] sm:$0xff]
    %v768 = vld [vmem:[%s7 + $0x30] sm:$0xff]
    %v769 = vld [vmem:[%s7 + $0x38] sm:$0xff]
    %v770 = vld [vmem:[%s7 + $0x40] sm:$0xff]
    %v771 = vld [vmem:[%s7 + $0x48] sm:$0xff]
    %v772 = vld [vmem:[%s7 + $0x50] sm:$0xff]
    %v773 = vld [vmem:[%s7 + $0x58] sm:$0xff]
    %v774 = vld [vmem:[%s7 + $0x60] sm:$0xff]
    %v775 = vld [vmem:[%s7 + $0x68] sm:$0xff]
    %v776 = vld [vmem:[%s7 + $0x70] sm:$0xff]
    %v777 = vld [vmem:[%s7 + $0x78] sm:$0xff]
    %v778 = vld [vmem:[%s8] sm:$0x1]
    %v780 = vlaneseq
    %v781 = vshrl.u32 %v780, 7
    %v782 = vsub.s32 0, %v781
    %v783 = vrot.slane %v778, %v782
    %785 = vmatprep.subr.mxu0 0.0
    %786 = vmatpush1.msra.mxu0 %v762
    %787 = vmatprep.subr.mxu0 0.0
    %788 = vmatpush1.msra.mxu0 %v763
    %789 = vmatprep.subr.mxu0 0.0
    %790 = vmatpush1.msra.mxu0 %v764
    %791 = vmatprep.subr.mxu0 0.0
    %792 = vmatpush1.msra.mxu0 %v765
    %793 = vmatprep.subr.mxu0 0.0
    %794 = vmatpush1.msra.mxu0 %v766
    %795 = vmatprep.subr.mxu0 0.0
    %796 = vmatpush1.msra.mxu0 %v767
    %797 = vmatprep.subr.mxu0 0.0
    %798 = vmatpush1.msra.mxu0 %v768
    %799 = vmatprep.subr.mxu0 0.0
    %800 = vmatpush1.msra.mxu0 %v769
    %801 = vmatprep.subr.mxu0 0.0
    %802 = vmatpush1.msra.mxu0 %v770
    %803 = vmatprep.subr.mxu0 0.0
    %804 = vmatpush1.msra.mxu0 %v771
    %805 = vmatprep.subr.mxu0 0.0
    %806 = vmatpush1.msra.mxu0 %v772
    %807 = vmatprep.subr.mxu0 0.0
    %808 = vmatpush1.msra.mxu0 %v773
    %809 = vmatprep.subr.mxu0 0.0
    %810 = vmatpush1.msra.mxu0 %v774
    %811 = vmatprep.subr.mxu0 0.0
    %812 = vmatpush1.msra.mxu0 %v775
    %813 = vmatprep.subr.mxu0 0.0
    %814 = vmatpush1.msra.mxu0 %v776
    %815 = vmatprep.subr.mxu0 0.0
    %816 = vmatpush1.msra.mxu0 %v777
    %817 = vmatprep.subr.mxu0 0.0
    %818 = vmatpush1.msra.mxu0 0.0
    %819 = vmatprep.subr.mxu0 0.0
    %820 = vmatpush1.msra.mxu0 0.0
    %821 = vmatprep.subr.mxu0 0.0
    %822 = vmatpush1.msra.mxu0 0.0
    %823 = vmatprep.subr.mxu0 0.0
    %824 = vmatpush1.msra.mxu0 0.0
    %825 = vmatprep.subr.mxu0 0.0
    %826 = vmatpush1.msra.mxu0 0.0
    %827 = vmatprep.subr.mxu0 0.0
    %828 = vmatpush1.msra.mxu0 0.0
    %829 = vmatprep.subr.mxu0 0.0
    %830 = vmatpush1.msra.mxu0 0.0
    %831 = vmatprep.subr.mxu0 0.0
    %832 = vmatpush1.msra.mxu0 0.0
    %833 = vmatprep.subr.mxu0 0.0
    %834 = vmatpush1.msra.mxu0 0.0
    %835 = vmatprep.subr.mxu0 0.0
    %836 = vmatpush1.msra.mxu0 0.0
    %837 = vmatprep.subr.mxu0 0.0
    %838 = vmatpush1.msra.mxu0 0.0
    %839 = vmatprep.subr.mxu0 0.0
    %840 = vmatpush1.msra.mxu0 0.0
    %841 = vmatprep.subr.mxu0 0.0
    %842 = vmatpush1.msra.mxu0 0.0
    %843 = vmatprep.subr.mxu0 0.0
    %844 = vmatpush1.msra.mxu0 0.0
    %845 = vmatprep.subr.mxu0 0.0
    %846 = vmatpush1.msra.mxu0 0.0
    %847 = vmatprep.subr.mxu0 0.0
    %848 = vmatpush1.msra.mxu0 0.0
    %849 = vmatprep.mubr.f32.mxu0 0.0
    %850 = vmatmul.mubr.f32.gmra.mrb[0].mxu0 %v761
    %v851 = vpop.f32.mrb[0].mxu0
    %v852 = vadd.f32 %v783, %v851
    %v853 = vpop.f32.mrb[0].mxu0
    %854 = vdwg.mxu0
    %vm855 = vcmask 9216
    %v856 = vsel %vm855, %v852, -inf
    %857 = vmax.xlane.f32.xlu0 %v856
    %v858 = vpop.xlane.xlu0 %857
    %v859 = vsub.f32 %v852, %v858
    %v860 = vmul.f32 %v859, 1.442695
    %v861 = vpow.pop %v860
    %v862 = vsel %vm855, %v861, 0.0
    %863 = vadd.xlane.f32.xlu0 %v862
    %v864 = vpop.xlane.xlu0 %863
    %v865 = vrcp.pop %v864
    %v866 = vmul.f32 %v861, %v865
    %867 = vst.msk [vmem:[#allocation5] sm:$0x3] %vm855, %v866
    // Predicated region
    $region42: #{tpu_custom_call.1} parent=1 // pred_check
      _
    $region43: #{tpu_custom_call.1} parent=1 // pred_check_branch
      %869 = sbr.rel (0) target = $region45
    $region44: #{tpu_custom_call.1} parent=1 // pred_region
      %s871 = ssub.s32 32, 32
      %872 = vsyncadd [#allocation4], %s871
      %s874 = sshll.u32 [#allocation5], 4
      %s875 = int_to_ptr.vmem [resolvable:$true] %s874
      %877 = dma.vmem_to_hbm [thread:$0]  %s875, 32, %s9, [#allocation4]
    $region45: #{tpu_custom_call.1} parent=1 // pred_fallthru
      _
    // Predicated region
    $region46: #{tpu_custom_call.1} parent=1 // pred_check
      _
    $region47: #{tpu_custom_call.1} parent=1 // pred_check_branch
      %879 = sbr.rel (0) target = $region49
    $region48: #{tpu_custom_call.1} parent=1 // pred_region
      %880 = dma.done [#allocation4], 32
    $region49: #{tpu_custom_call.1} parent=1 // pred_fallthru
      _
    %881 = vsyncpa [#allocation3], 1
    %882 = vsyncpa [#allocation4], 1

</llo_original>
